<compile_context>
chip_gen: v7x
topology: tpu7x:2x2x1
jax: 0.10.0
libtpu: 0.0.40
codegen_flags: <defaults>
</compile_context>

<pallas_src>
import functools

import numpy as np
import jax
import jax.numpy as jnp
from jax.experimental import pallas as pl
from jax.experimental.pallas import tpu as pltpu

# ----------------------------------------------------------------------------
# Synthetic stand-ins for the external `bk` (background-knowledge) module.
# ----------------------------------------------------------------------------
PROP_IDX_DICT = {
    "obj_num": 0,
    "shape_tri": 1,
    "shape_sq": 2,
    "shape_cir": 3,
    "color_r": 4,
    "color_g": 5,
    "color_b": 6,
    "size": 7,
}
BK_SHAPES = ["none", "triangle", "square", "circle"]

SHAPE_INDICES = (
    PROP_IDX_DICT["shape_tri"],
    PROP_IDX_DICT["shape_sq"],
    PROP_IDX_DICT["shape_cir"],
)

MAX_GROUP_TILE = 2048   # lanes (groups) per grid step; multiple of 128
MIN_PALLAS_BATCH = 64   # below this, plain XLA is strictly cheaper


def _round_up(x, m):
    return ((x + m - 1) // m) * m


def _choose_group_tile(b):
    """Pick the lane-tile size: big blocks, but keep >=2 grid steps when the
    batch allows it so ("parallel",) can use both TensorCores on v7x."""
    b128 = _round_up(max(b, 1), 128)
    if b128 <= 128:
        return 128
    if b128 >= 2 * MAX_GROUP_TILE:
        return MAX_GROUP_TILE
    return _round_up((b128 + 1) // 2, 128)


# ----------------------------------------------------------------------------
# Pallas kernel: groups on the lane axis, one lane-dense result per group.
# ----------------------------------------------------------------------------
def _vf_shape_kernel(gt_ref, x_ref, o_ref, *, n_objects, n_props):
    # gt_ref: VMEM (1, G)   int32 — ground-truth shape index per group
    # x_ref : VMEM (N*P, G) f32   — flattened (object, property) rows; groups
    #                               packed along the lanes
    # o_ref : VMEM (1, G)   f32   — has_label per group (lane-dense, 4 B/group)

    # Object-0 shape columns (needed for both the gate and the argmax).
    v0 = x_ref[pl.ds(SHAPE_INDICES[0], 1), :]          # shape_tri, row 0
    v1 = x_ref[pl.ds(SHAPE_INDICES[1], 1), :]          # shape_sq,  row 0
    v2 = x_ref[pl.ds(SHAPE_INDICES[2], 1), :]          # shape_cir, row 0

    # Gate: sum of group_data[:, shape_indices] over ALL object rows
    # (12 static sublane-row strips; pure VPU adds, no masks/iotas).
    total = v0 + v1 + v2
    for n in range(1, n_objects):
        base = n * n_props
        for c in SHAPE_INDICES:
            total = total + x_ref[pl.ds(base + c, 1), :]

    # torch.argmax(dim=1) over the 3 shape columns of object row 0
    # (first maximal column wins), as a direct 3-way compare/select.
    arg12 = jnp.where(v1 >= v2, jnp.int32(1), jnp.int32(2))
    arg0 = jnp.where(v0 >= jnp.maximum(v1, v2), jnp.int32(0), arg12)

    # TODO(synk): the literal PyTorch compares the bound method `.sum` to 0
    # (always False); we implement the intended `.sum() == 0` gate.
    group_shape = jnp.where(total == jnp.float32(0.0), jnp.int32(0), arg0 + 1)

    o_ref[...] = (group_shape == gt_ref[...]).astype(jnp.float32)


# ----------------------------------------------------------------------------
# Wrappers
# ----------------------------------------------------------------------------
@functools.partial(jax.jit, static_argnums=(2, 3, 4))
def _vf_shape_pallas(gd_t, gt_row, group_tile, n_objects, n_props):
    """gd_t: (N*P, B_pad) f32 with B_pad % group_tile == 0; gt_row: (1, B_pad)."""
    n_rows, b_pad = gd_t.shape
    kernel = functools.partial(
        _vf_shape_kernel, n_objects=n_objects, n_props=n_props)

    out = pl.pallas_call(
        kernel,
        out_shape=jax.ShapeDtypeStruct((1, b_pad), jnp.float32),
        grid=(b_pad // group_tile,),
        in_specs=[
            pl.BlockSpec((1, group_tile), lambda g: (0, g)),        # gt indices
            pl.BlockSpec((n_rows, group_tile), lambda g: (0, g)),   # group data
        ],
        out_specs=pl.BlockSpec((1, group_tile), lambda g: (0, g)),
        compiler_params=pltpu.CompilerParams(
            dimension_semantics=("parallel",)),     # 2-TC sharding on v7x
    )(gt_row, gd_t)
    return out[0]


def _vf_shape_xla(group_data_b, gt_idx_b):
    """Plain-XLA path for tiny batches (a padded pallas_call is pure overhead)."""
    sv = group_data_b[:, :, jnp.asarray(SHAPE_INDICES)]            # (B, N, 3)
    total = jnp.sum(sv, axis=(1, 2))                               # (B,)
    arg0 = jnp.argmax(sv[:, 0, :], axis=-1).astype(jnp.int32)      # (B,)
    group_shape = jnp.where(total == 0.0, jnp.int32(0), arg0 + 1)
    return (group_shape == gt_idx_b).astype(jnp.float32)


def vf_shape_batched(group_data_b, gt_idx_b):
    """Batched VFShape forward for B groups.

    group_data_b: (B, N_objects, N_props) float; gt_idx_b: (B,) int shape index.
    """
    group_data_b = jnp.asarray(group_data_b, jnp.float32)
    gt_idx_b = jnp.asarray(gt_idx_b, jnp.int32)
    b, n, p = group_data_b.shape

    if b < MIN_PALLAS_BATCH:
        return _vf_shape_xla(group_data_b, gt_idx_b)

    group_tile = _choose_group_tile(b)
    b_pad = _round_up(b, group_tile)

    # Flip layout so groups sit on the lane axis (wrapper-side layout plumbing).
    gd_t = group_data_b.reshape(b, n * p).T                        # (N*P, B)
    if b_pad != b:
        gd_t = jnp.pad(gd_t, ((0, 0), (0, b_pad - b)))
        # pad gt with -1 so padded groups always evaluate to has_label = 0.0
        gt_idx_b = jnp.pad(gt_idx_b, (0, b_pad - b), constant_values=-1)
    gt_row = gt_idx_b.reshape(1, b_pad)

    out = _vf_shape_pallas(gd_t, gt_row, group_tile, n, p)
    return out[:b]


def vf_shape(group_data, gt_shape_name):
    """Single-group module-equivalent call (mirrors VFShape.forward).

    Runs on the plain-XLA path: a Pallas launch for one group is all overhead.
    """
    if group_data is None:                          # `group_data is None` branch
        return jnp.float32(0.0)
    gt_idx = jnp.asarray([BK_SHAPES.index(gt_shape_name)], jnp.int32)
    gd = jnp.asarray(group_data, jnp.float32)[None]
    return vf_shape_batched(gd, gt_idx)[0]


# ----------------------------------------------------------------------------
# Pure reference (mirrors the PyTorch forward's intended semantics)
# ----------------------------------------------------------------------------
def vf_shape_ref(group_data, gt_shape_name):
    if group_data is None:
        return 0.0
    gd = np.asarray(group_data, np.float32)
    sv = gd[:, list(SHAPE_INDICES)]
    if float(sv.sum()) == 0.0:
        group_shape = 0
    else:
        # torch argmax(dim=1) + 1; float(...) of the comparison is only defined
        # for a single object row, so the defined case uses row 0.
        group_shape = int(np.argmax(sv[0])) + 1
    return float(BK_SHAPES.index(gt_shape_name) == group_shape)


if __name__ == "__main__":
    key = jax.random.PRNGKey(0)
    B, N_OBJ, N_PROP = 300, 4, len(PROP_IDX_DICT)   # non-multiple of 128: tests padding

    data = jax.random.uniform(key, (B, N_OBJ, N_PROP), dtype=jnp.float32)
    # group 0: clear max in row 0 / shape_sq  -> group_shape = 2 ("square")
    data = data.at[0, 0, PROP_IDX_DICT["shape_sq"]].set(5.0)
    # group 1: clear max in row 0 / shape_cir -> group_shape = 3 ("circle")
    data = data.at[1, 0, PROP_IDX_DICT["shape_cir"]].set(5.0)
    # group 2: all shape columns zero          -> group_shape = 0 ("none")
    for c in SHAPE_INDICES:
        data = data.at[2, :, c].set(0.0)

    gt_names = [BK_SHAPES[(i % 3) + 1] for i in range(B)]
    gt_names[0] = "square"     # expect 1.0
    gt_names[1] = "triangle"   # expect 0.0
    gt_names[2] = "none"       # expect 1.0 (sum gate -> group_shape == 0)
    gt_idx = jnp.asarray([BK_SHAPES.index(nm) for nm in gt_names], jnp.int32)

    out = vf_shape_batched(data, gt_idx)            # Pallas path (grid of 2 tiles)
    out = jax.block_until_ready(out)

    data_np = np.asarray(data)
    ref = np.asarray([vf_shape_ref(data_np[i], gt_names[i]) for i in range(B)],
                     np.float32)
    assert out.shape == (B,)
    assert float(np.max(np.abs(np.asarray(out) - ref))) < 1e-6

    # Single-call path, including the `group_data is None` early-out (XLA path).
    r_none = vf_shape(None, "square")
    assert float(r_none) == 0.0
    r0 = jax.block_until_ready(vf_shape(data_np[0], "square"))
    assert abs(float(r0) - vf_shape_ref(data_np[0], "square")) < 1e-6

    print("KERNEL_OK")
</pallas_src>

<mosaic_0001>
module attributes {stable_mosaic.version = 11 : i64} {
  func.func @_vf_shape_kernel(%arg0: i32, %arg1: memref<1x256xi32, #tpu.memory_space<vmem>>, %arg2: memref<32x256xf32, #tpu.memory_space<vmem>>, %arg3: memref<1x256xf32, #tpu.memory_space<vmem>>) attributes {dimension_semantics = [#tpu.dimension_semantics<parallel>], iteration_bounds = array<i64: 2>, scalar_prefetch = 0 : i64, scratch_operands = 0 : i64, tpu.core_type = #tpu.core_type<tc>, window_params = [{transform_indices = @transform_0, window_bounds = array<i64: 1, 256>}, {transform_indices = @transform_1, window_bounds = array<i64: 32, 256>}, {transform_indices = @transform_2, window_bounds = array<i64: 1, 256>}]} {
    %c1 = arith.constant 1 : index
    %c0 = arith.constant 0 : index
    %0 = vector.load %arg2[%c1, %c0] : memref<32x256xf32, #tpu.memory_space<vmem>>, vector<1x256xf32>
    %c2 = arith.constant 2 : index
    %c0_0 = arith.constant 0 : index
    %1 = vector.load %arg2[%c2, %c0_0] : memref<32x256xf32, #tpu.memory_space<vmem>>, vector<1x256xf32>
    %c3 = arith.constant 3 : index
    %c0_1 = arith.constant 0 : index
    %2 = vector.load %arg2[%c3, %c0_1] : memref<32x256xf32, #tpu.memory_space<vmem>>, vector<1x256xf32>
    %3 = arith.addf %0, %1 : vector<1x256xf32>
    %4 = arith.addf %3, %2 : vector<1x256xf32>
    %c9 = arith.constant 9 : index
    %c0_2 = arith.constant 0 : index
    %5 = vector.load %arg2[%c9, %c0_2] : memref<32x256xf32, #tpu.memory_space<vmem>>, vector<1x256xf32>
    %6 = arith.addf %4, %5 : vector<1x256xf32>
    %c10 = arith.constant 10 : index
    %c0_3 = arith.constant 0 : index
    %7 = vector.load %arg2[%c10, %c0_3] : memref<32x256xf32, #tpu.memory_space<vmem>>, vector<1x256xf32>
    %8 = arith.addf %6, %7 : vector<1x256xf32>
    %c11 = arith.constant 11 : index
    %c0_4 = arith.constant 0 : index
    %9 = vector.load %arg2[%c11, %c0_4] : memref<32x256xf32, #tpu.memory_space<vmem>>, vector<1x256xf32>
    %10 = arith.addf %8, %9 : vector<1x256xf32>
    %c17 = arith.constant 17 : index
    %c0_5 = arith.constant 0 : index
    %11 = vector.load %arg2[%c17, %c0_5] : memref<32x256xf32, #tpu.memory_space<vmem>>, vector<1x256xf32>
    %12 = arith.addf %10, %11 : vector<1x256xf32>
    %c18 = arith.constant 18 : index
    %c0_6 = arith.constant 0 : index
    %13 = vector.load %arg2[%c18, %c0_6] : memref<32x256xf32, #tpu.memory_space<vmem>>, vector<1x256xf32>
    %14 = arith.addf %12, %13 : vector<1x256xf32>
    %c19 = arith.constant 19 : index
    %c0_7 = arith.constant 0 : index
    %15 = vector.load %arg2[%c19, %c0_7] : memref<32x256xf32, #tpu.memory_space<vmem>>, vector<1x256xf32>
    %16 = arith.addf %14, %15 : vector<1x256xf32>
    %c25 = arith.constant 25 : index
    %c0_8 = arith.constant 0 : index
    %17 = vector.load %arg2[%c25, %c0_8] : memref<32x256xf32, #tpu.memory_space<vmem>>, vector<1x256xf32>
    %18 = arith.addf %16, %17 : vector<1x256xf32>
    %c26 = arith.constant 26 : index
    %c0_9 = arith.constant 0 : index
    %19 = vector.load %arg2[%c26, %c0_9] : memref<32x256xf32, #tpu.memory_space<vmem>>, vector<1x256xf32>
    %20 = arith.addf %18, %19 : vector<1x256xf32>
    %c27 = arith.constant 27 : index
    %c0_10 = arith.constant 0 : index
    %21 = vector.load %arg2[%c27, %c0_10] : memref<32x256xf32, #tpu.memory_space<vmem>>, vector<1x256xf32>
    %22 = arith.addf %20, %21 : vector<1x256xf32>
    %23 = arith.cmpf oge, %1, %2 : vector<1x256xf32>
    %c1_i32 = arith.constant 1 : i32
    %c2_i32 = arith.constant 2 : i32
    %24 = vector.broadcast %c1_i32 : i32 to vector<1x256xi32>
    %25 = vector.broadcast %c2_i32 : i32 to vector<1x256xi32>
    %26 = arith.select %23, %24, %25 : vector<1x256xi1>, vector<1x256xi32>
    %27 = arith.maximumf %1, %2 : vector<1x256xf32>
    %28 = arith.cmpf oge, %0, %27 : vector<1x256xf32>
    %c0_i32 = arith.constant 0 : i32
    %29 = vector.broadcast %c0_i32 : i32 to vector<1x256xi32>
    %30 = arith.select %28, %29, %26 : vector<1x256xi1>, vector<1x256xi32>
    %cst = arith.constant 0.000000e+00 : f32
    %31 = vector.broadcast %cst : f32 to vector<1x256xf32>
    %32 = arith.cmpf oeq, %22, %31 : vector<1x256xf32>
    %c1_i32_11 = arith.constant 1 : i32
    %33 = vector.broadcast %c1_i32_11 : i32 to vector<1x256xi32>
    %34 = arith.addi %30, %33 : vector<1x256xi32>
    %c0_i32_12 = arith.constant 0 : i32
    %35 = vector.broadcast %c0_i32_12 : i32 to vector<1x256xi32>
    %36 = arith.select %32, %35, %34 : vector<1x256xi1>, vector<1x256xi32>
    %c0_13 = arith.constant 0 : index
    %c0_14 = arith.constant 0 : index
    %37 = vector.load %arg1[%c0_13, %c0_14] : memref<1x256xi32, #tpu.memory_space<vmem>>, vector<1x256xi32>
    %38 = arith.cmpi eq, %36, %37 : vector<1x256xi32>
    %39 = arith.extui %38 : vector<1x256xi1> to vector<1x256xi32>
    %40 = arith.sitofp %39 : vector<1x256xi32> to vector<1x256xf32>
    %c0_15 = arith.constant 0 : index
    %c0_16 = arith.constant 0 : index
    %41 = vector.load %arg3[%c0_15, %c0_16] : memref<1x256xf32, #tpu.memory_space<vmem>>, vector<1x256xf32>
    tpu.vector_store %arg3[%c0_15, %c0_16], %40 {strides = array<i32>} : memref<1x256xf32, #tpu.memory_space<vmem>>, vector<1x256xf32>,
    return
  }
  func.func @transform_0(%arg0: i32) -> (i32, i32) {
    %c0_i32 = arith.constant 0 : i32
    %c0_i32_0 = arith.constant 0 : i32
    return %c0_i32, %arg0 : i32, i32
  }
  func.func @transform_1(%arg0: i32) -> (i32, i32) {
    %c0_i32 = arith.constant 0 : i32
    %c0_i32_0 = arith.constant 0 : i32
    return %c0_i32, %arg0 : i32, i32
  }
  func.func @transform_2(%arg0: i32) -> (i32, i32) {
    %c0_i32 = arith.constant 0 : i32
    %c0_i32_0 = arith.constant 0 : i32
    return %c0_i32, %arg0 : i32, i32
  }
}

</mosaic_0001>

<llo_original>
// kernel: _vf_shape_pallas.1
$region0: #{_vf_shape_pallas.1}
  #allocation0 [shape = 'u32[]', space=smem, size = 0x4, offset = 0x4, fixed_abs, tag = 'smem constant byte address 0x4 - core index']
  #allocation1 [shape = 'u32[144,128]{1,0:T(1,128)}', space=vmem, size = 0x12000, scoped, tag = 'internal scratch']
  %s0 = inlined_call_operand.hbm [shape: s32[1,512], index: 0, kind: input, shape index: {}]
  %s1 = inlined_call_operand.hbm [shape: f32[32,512], index: 1, kind: input, shape index: {}]
  %s2 = inlined_call_operand.hbm [shape: f32[1,512], index: 2, kind: output, shape index: {}]
  %s3 = sld [smem:[#allocation0]]
  $region49: #{_vf_shape_pallas.1} parent=0
    _
  %s5 = ssub.s32 1, %s3
  %s6 = scalar_select 0, %s5, %s3
  $region1: #{_vf_shape_pallas.1} parent=0
    #allocation2 [shape = 'u8[2048]{0}', space=vmem, size = 0x800, scoped, tag = 'input window, operand 0']
    #allocation3 [shape = 's32[2]{0}', space=sflag, size = 0x8, scoped, tag = 'scoped memory for _vf_shape_pallas.1']
    #allocation4 [shape = 's32[2]{0}', space=sflag, size = 0x8, scoped, tag = 'scoped memory for _vf_shape_pallas.1']
    #allocation5 [shape = 'u8[65536]{0}', space=vmem, size = 0x10000, scoped, tag = 'input window, operand 1']
    #allocation6 [shape = 's32[2]{0}', space=sflag, size = 0x8, scoped, tag = 'scoped memory for _vf_shape_pallas.1']
    #allocation7 [shape = 'u8[2048]{0}', space=vmem, size = 0x800, scoped, tag = 'output window, operand 0']
    %7 = vsyncpa [#allocation3], 0
    %s8 = scalar_lea.sflag [#allocation3], 1
    %9 = vsyncpa %s8, 0
    %10 = vsyncpa [#allocation6], 0
    %s11 = scalar_lea.sflag [#allocation6], 1
    %12 = vsyncpa %s11, 0
    %13 = vsyncpa [#allocation4], 0
    %s14 = scalar_lea.sflag [#allocation4], 1
    %15 = vsyncpa %s14, 0
    loop: start=0, step=1, limit=4
    $region2: #{_vf_shape_pallas.1} parent=1 // loop_pre_header
      _
    $region3: #{_vf_shape_pallas.1} parent=1 // loop_header
      %s17 = sphi 0, %s21
      %p18 = scmp.ge.s32.totalorder %s17, 4
      %s27 = sphi 0, %s29
      %s30 = sphi 0, %s27
      %s31 = sphi 0, %s30
      %s47 = sphi 0, %s31
      %s53 = sphi 0, %s55
      %s56 = sphi 0, %s53
      %s57 = sphi 0, %s56
      %s73 = sphi 0, %s57
      %s79 = sphi 0, %s81
      %s82 = sphi 0, %s79
      %s83 = sphi 0, %s82
      %s99 = sphi 0, %s83
    $region4: #{_vf_shape_pallas.1} parent=1 // loop_header_branch
      %20 = sbr.rel (%p18) target = $region8
    $region5: #{_vf_shape_pallas.1} parent=1 // loop_body
      %s22 = ssub.s32 %s17, 1
      %s23 = ssub.s32 %s17, 2
      %s24 = sadd.s32 %s17, 1
      %s25 = ssub.s32 %s17, %s24
      %p26 = scmp.eq.s32.totalorder %s25, 0
      %s28 = sadd.s32 %s27, 1
      %s29 = scalar_select %p26, %s27, %s28
      %p32 = pneg %p26
      %p33 = scmp.eq.s32.totalorder %s17, 1
      %p34 = por %p32, %p33
      %p35 = scmp.ne.s32.totalorder %s27, %s30
      %p36 = scmp.eq.s32.totalorder %s17, 0
      %p37 = por %p35, %p36
      %p38 = scmp.ne.s32.totalorder %s27, %s30
      %p39 = scmp.eq.s32.totalorder %s22, 1
      %p40 = por %p38, %p39
      %p41 = scmp.ne.s32.totalorder %s30, %s31
      %p42 = scmp.eq.s32.totalorder %s22, 0
      %p43 = por %p41, %p42
      %p44 = scmp.ne.s32.totalorder %s30, %s31
      %p45 = scmp.eq.s32.totalorder %s23, 1
      %p46 = por %p44, %p45
      %p48 = scmp.ne.s32.totalorder %s31, %s47
      %p49 = scmp.eq.s32.totalorder %s23, 0
      %p50 = por %p48, %p49
      %s51 = ssub.s32 %s17, %s24
      %p52 = scmp.eq.s32.totalorder %s51, 0
      %s54 = sadd.s32 %s53, 1
      %s55 = scalar_select %p52, %s53, %s54
      %p58 = pneg %p52
      %p59 = scmp.eq.s32.totalorder %s17, 1
      %p60 = por %p58, %p59
      %p61 = scmp.ne.s32.totalorder %s53, %s56
      %p62 = scmp.eq.s32.totalorder %s17, 0
      %p63 = por %p61, %p62
      %p64 = scmp.ne.s32.totalorder %s53, %s56
      %p65 = scmp.eq.s32.totalorder %s22, 1
      %p66 = por %p64, %p65
      %p67 = scmp.ne.s32.totalorder %s56, %s57
      %p68 = scmp.eq.s32.totalorder %s22, 0
      %p69 = por %p67, %p68
      %p70 = scmp.ne.s32.totalorder %s56, %s57
      %p71 = scmp.eq.s32.totalorder %s23, 1
      %p72 = por %p70, %p71
      %p74 = scmp.ne.s32.totalorder %s57, %s73
      %p75 = scmp.eq.s32.totalorder %s23, 0
      %p76 = por %p74, %p75
      %s77 = ssub.s32 %s17, %s24
      %p78 = scmp.eq.s32.totalorder %s77, 0
      %s80 = sadd.s32 %s79, 1
      %s81 = scalar_select %p78, %s79, %s80
      %p84 = pneg %p78
      %p85 = scmp.eq.s32.totalorder %s17, 1
      %p86 = por %p84, %p85
      %p87 = scmp.ne.s32.totalorder %s79, %s82
      %p88 = scmp.eq.s32.totalorder %s17, 0
      %p89 = por %p87, %p88
      %p90 = scmp.ne.s32.totalorder %s79, %s82
      %p91 = scmp.eq.s32.totalorder %s22, 1
      %p92 = por %p90, %p91
      %p93 = scmp.ne.s32.totalorder %s82, %s83
      %p94 = scmp.eq.s32.totalorder %s22, 0
      %p95 = por %p93, %p94
      %p96 = scmp.ne.s32.totalorder %s82, %s83
      %p97 = scmp.eq.s32.totalorder %s23, 1
      %p98 = por %p96, %p97
      %p100 = scmp.ne.s32.totalorder %s83, %s99
      %p101 = scmp.eq.s32.totalorder %s23, 0
      %p102 = por %p100, %p101
      %p103 = scmp.le.s32.totalorder 1, %s17
      %p104 = scmp.lt.s32.totalorder %s17, 3
      %p105 = pnand %p103, %p104
      %p106 = pneg %p105
      // Predicated region
      $region9: #{_vf_shape_pallas.1} parent=5 // pred_check
        _
      $region10: #{_vf_shape_pallas.1} parent=5 // pred_check_branch
        %108 = sbr.rel (%p105) target = $region12
      $region11: #{_vf_shape_pallas.1} parent=5 // pred_region
        %s109 = ssub.s32 %s17, 1
      $region12: #{_vf_shape_pallas.1} parent=5 // pred_fallthru
        _
      %p110 = scmp.lt.s32.totalorder %s17, 2
      // Predicated region
      $region13: #{_vf_shape_pallas.1} parent=5 // pred_check
        %p111 = pneg %p110
      $region14: #{_vf_shape_pallas.1} parent=5 // pred_check_branch
        %113 = sbr.rel (%p111) target = $region16
      $region15: #{_vf_shape_pallas.1} parent=5 // pred_region
        // Predicated region
        $region17: #{_vf_shape_pallas.1} parent=15 // pred_check
          %p114 = pneg %p37
        $region18: #{_vf_shape_pallas.1} parent=15 // pred_check_branch
          %116 = sbr.rel (%p114) target = $region20
        $region19: #{_vf_shape_pallas.1} parent=15 // pred_region
          %s117 = sand.u32 %s27, 1
          %s118 = scalar_lea.sflag [#allocation3], %s117
          %s119 = sand.u32 %s27, 1
          %s120 = smul.addr %s119, 2
          %s121 = scalar_lea.vmem [#allocation2], %s120
          %s122 = smul.u32 2, %s17
          %s124 = ssub.s32 32, 32
          %125 = vsyncadd %s118, %s124
          %s126 = smul.addr %s122, 16
          %s127 = scalar_lea.hbm %s0, %s126
          %s129 = sshll.u32 %s121, 4
          %s130 = int_to_ptr.vmem [resolvable:$true] %s129
          %132 = dma.hbm_to_vmem [thread:$0]  %s127, 32, %s130, %s118
        $region20: #{_vf_shape_pallas.1} parent=15 // pred_fallthru
          _
        // Predicated region
        $region21: #{_vf_shape_pallas.1} parent=15 // pred_check
          %p133 = pneg %p63
        $region22: #{_vf_shape_pallas.1} parent=15 // pred_check_branch
          %135 = sbr.rel (%p133) target = $region24
        $region23: #{_vf_shape_pallas.1} parent=15 // pred_region
          %s136 = sand.u32 %s53, 1
          %s137 = scalar_lea.sflag [#allocation6], %s136
          %s138 = sand.u32 %s53, 1
          %s139 = smul.addr %s138, 64
          %s140 = scalar_lea.vmem [#allocation5], %s139
          %s141 = smul.u32 2, %s17
          %s143 = ssub.s32 1024, 1024
          %144 = vsyncadd %s137, %s143
          %s145 = smul.addr %s141, 128
          %s146 = scalar_lea.hbm %s1, %s145
          %s147 = sshll.u32 %s140, 4
          %s148 = int_to_ptr.vmem [resolvable:$true] %s147
          %153 = dma.hbm_to_vmem [thread:$0]  %s146, 1024, %s148, %s137, 512, 256, 16
        $region24: #{_vf_shape_pallas.1} parent=15 // pred_fallthru
          _
      $region16: #{_vf_shape_pallas.1} parent=5 // pred_fallthru
        _
      %p154 = scmp.le.s32.totalorder 1, %s17
      %p155 = scmp.lt.s32.totalorder %s17, 3
      %p156 = pnand %p154, %p155
      %p157 = pneg %p156
      // Predicated region
      $region25: #{_vf_shape_pallas.1} parent=5 // pred_check
        _
      $region26: #{_vf_shape_pallas.1} parent=5 // pred_check_branch
        %159 = sbr.rel (%p156) target = $region28
      $region27: #{_vf_shape_pallas.1} parent=5 // pred_region
        %s160 = ssub.s32 %s17, 1
        %s161 = sand.u32 %s30, 1
        %s162 = scalar_lea.sflag [#allocation3], %s161
        %s163 = sand.u32 %s30, 1
        %s164 = smul.addr %s163, 2
        %s165 = scalar_lea.vmem [#allocation2], %s164
        // Predicated region
        $region29: #{_vf_shape_pallas.1} parent=27 // pred_check
          %p166 = pneg %p43
        $region30: #{_vf_shape_pallas.1} parent=27 // pred_check_branch
          %168 = sbr.rel (%p166) target = $region32
        $region31: #{_vf_shape_pallas.1} parent=27 // pred_region
          %169 = dma.done %s162, 32
        $region32: #{_vf_shape_pallas.1} parent=27 // pred_fallthru
          _
        %s170 = sand.u32 %s56, 1
        %s171 = scalar_lea.sflag [#allocation6], %s170
        %s172 = sand.u32 %s56, 1
        %s173 = smul.addr %s172, 64
        %s174 = scalar_lea.vmem [#allocation5], %s173
        // Predicated region
        $region33: #{_vf_shape_pallas.1} parent=27 // pred_check
          %p175 = pneg %p69
        $region34: #{_vf_shape_pallas.1} parent=27 // pred_check_branch
          %177 = sbr.rel (%p175) target = $region36
        $region35: #{_vf_shape_pallas.1} parent=27 // pred_region
          %178 = dma.done %s171, 1024
        $region36: #{_vf_shape_pallas.1} parent=27 // pred_fallthru
          _
        %s179 = sand.u32 %s30, 1
        %s180 = scalar_lea.sflag [#allocation3], %s179
        %s181 = sand.u32 %s30, 1
        %s182 = smul.addr %s181, 2
        %s183 = scalar_lea.vmem [#allocation2], %s182
        %p184 = pneg %p43
        %p185 = pneg %p40
        %s186 = sand.u32 %s56, 1
        %s187 = scalar_lea.sflag [#allocation6], %s186
        %s188 = sand.u32 %s56, 1
        %s189 = smul.addr %s188, 64
        %s190 = scalar_lea.vmem [#allocation5], %s189
        %p191 = pneg %p69
        %p192 = pneg %p66
        %p193 = pneg %p95
        %p194 = pneg %p92
        %s195 = sand.u32 %s82, 1
        %s196 = scalar_lea.sflag [#allocation4], %s195
        %s197 = sand.u32 %s82, 1
        %s198 = smul.addr %s197, 2
        %s199 = scalar_lea.vmem [#allocation7], %s198
        %s200 = smul.u32 2, %s22
        %s201 = smul.u32 2, %s22
        %s202 = smul.u32 2, %s22
        %s203 = scalar_lea.vmem %s174, 1 [#allocation5]
        %v204 = vld [vmem:[%s203] ss:$8 sm:$0x3]
        %s205 = scalar_lea.vmem %s174, 2 [#allocation5]
        %v206 = vld [vmem:[%s205] ss:$8 sm:$0x3]
        %s207 = scalar_lea.vmem %s174, 3 [#allocation5]
        %v208 = vld [vmem:[%s207] ss:$8 sm:$0x3]
        %v209 = vadd.f32 %v204, %v206
        %v210 = vadd.f32 %v209, %v208
        %s211 = scalar_lea.vmem %s174, 17 [#allocation5]
        %v212 = vld [vmem:[%s211] ss:$8 sm:$0x3]
        %v213 = vadd.f32 %v210, %v212
        %s214 = scalar_lea.vmem %s174, 18 [#allocation5]
        %v215 = vld [vmem:[%s214] ss:$8 sm:$0x3]
        %v216 = vadd.f32 %v213, %v215
        %s217 = scalar_lea.vmem %s174, 19 [#allocation5]
        %v218 = vld [vmem:[%s217] ss:$8 sm:$0x3]
        %v219 = vadd.f32 %v216, %v218
        %s220 = scalar_lea.vmem %s174, 33 [#allocation5]
        %v221 = vld [vmem:[%s220] ss:$8 sm:$0x3]
        %v222 = vadd.f32 %v219, %v221
        %s223 = scalar_lea.vmem %s174, 34 [#allocation5]
        %v224 = vld [vmem:[%s223] ss:$8 sm:$0x3]
        %v225 = vadd.f32 %v222, %v224
        %s226 = scalar_lea.vmem %s174, 35 [#allocation5]
        %v227 = vld [vmem:[%s226] ss:$8 sm:$0x3]
        %v228 = vadd.f32 %v225, %v227
        %s229 = scalar_lea.vmem %s174, 49 [#allocation5]
        %v230 = vld [vmem:[%s229] ss:$8 sm:$0x3]
        %v231 = vadd.f32 %v228, %v230
        %s232 = scalar_lea.vmem %s174, 50 [#allocation5]
        %v233 = vld [vmem:[%s232] ss:$8 sm:$0x3]
        %v234 = vadd.f32 %v231, %v233
        %s235 = scalar_lea.vmem %s174, 51 [#allocation5]
        %v236 = vld [vmem:[%s235] ss:$8 sm:$0x3]
        %v237 = vadd.f32 %v234, %v236
        %vm238 = vcmp.ge.f32.partialorder %v206, %v208
        %v239 = vsel %vm238, 1, 2
        %v240 = vmax.f32 %v206, %v208
        %vm241 = vcmp.ge.f32.partialorder %v204, %v240
        %v242 = vsel %vm241, 0, %v239
        %vm243 = vcmp.eq.f32.partialorder %v237, 0.0
        %v244 = vadd.s32 %v242, 1
        %v245 = vsel %vm243, 0, %v244
        %v246 = vld [vmem:[%s165] sm:$0x3]
        %vm247 = vcmp.eq.s32.totalorder %v245, %v246
        %v248 = vsel %vm247, 1, 0
        %v249 = vcvt.s32.f32 %v248
        %v250 = vlaneseq
        %vm251 = vcmp.ge.s32.totalorder %v250, 0
        %vm252 = vcmp.lt.s32.totalorder %v250, 256
        %vm253 = vmand %vm251, %vm252
        %254 = vst.msk [vmem:[%s199] sm:$0x3] %vm253, %v249
        %s255 = sand.u32 %s82, 1
        %s256 = scalar_lea.sflag [#allocation4], %s255
        %s257 = sand.u32 %s82, 1
        %s258 = smul.addr %s257, 2
        %s259 = scalar_lea.vmem [#allocation7], %s258
        // Predicated region
        $region37: #{_vf_shape_pallas.1} parent=27 // pred_check
          %p260 = pneg %p92
        $region38: #{_vf_shape_pallas.1} parent=27 // pred_check_branch
          %262 = sbr.rel (%p260) target = $region40
        $region39: #{_vf_shape_pallas.1} parent=27 // pred_region
          %s263 = smul.u32 2, %s22
          %s265 = ssub.s32 32, 32
          %266 = vsyncadd %s256, %s265
          %s267 = smul.addr %s263, 16
          %s268 = scalar_lea.hbm %s2, %s267
          %s270 = sshll.u32 %s259, 4
          %s271 = int_to_ptr.vmem [resolvable:$true] %s270
          %273 = dma.vmem_to_hbm [thread:$0]  %s271, 32, %s268, %s256
        $region40: #{_vf_shape_pallas.1} parent=27 // pred_fallthru
          _
      $region28: #{_vf_shape_pallas.1} parent=5 // pred_fallthru
        _
      %p274 = scmp.le.s32.totalorder 2, %s17
      // Predicated region
      $region41: #{_vf_shape_pallas.1} parent=5 // pred_check
        %p275 = pneg %p274
      $region42: #{_vf_shape_pallas.1} parent=5 // pred_check_branch
        %277 = sbr.rel (%p275) target = $region44
      $region43: #{_vf_shape_pallas.1} parent=5 // pred_region
        %s278 = ssub.s32 %s17, 2
        // Predicated region
        $region45: #{_vf_shape_pallas.1} parent=43 // pred_check
          %p279 = pneg %p98
        $region46: #{_vf_shape_pallas.1} parent=43 // pred_check_branch
          %281 = sbr.rel (%p279) target = $region48
        $region47: #{_vf_shape_pallas.1} parent=43 // pred_region
          %s282 = sand.u32 %s83, 1
          %s283 = scalar_lea.sflag [#allocation4], %s282
          %s284 = sand.u32 %s83, 1
          %s285 = smul.addr %s284, 2
          %s286 = scalar_lea.vmem [#allocation7], %s285
          %287 = dma.done %s283, 32
        $region48: #{_vf_shape_pallas.1} parent=43 // pred_fallthru
          _
      $region44: #{_vf_shape_pallas.1} parent=5 // pred_fallthru
        _
    $region6: #{_vf_shape_pallas.1} parent=1 // loop_footer
      %s21 = sadd.s32 1, %s17
    $region7: #{_vf_shape_pallas.1} parent=1 // loop_footer_branch
      %16 = sbr.rel target = $region3
    $region8: #{_vf_shape_pallas.1} parent=1 // loop_exit
      _
    %288 = vsyncpa [#allocation3], 1
    %s289 = scalar_lea.sflag [#allocation3], 1
    %290 = vsyncpa %s289, 1
    %291 = vsyncpa [#allocation6], 1
    %s292 = scalar_lea.sflag [#allocation6], 1
    %293 = vsyncpa %s292, 1
    %294 = vsyncpa [#allocation4], 1
    %s295 = scalar_lea.sflag [#allocation4], 1
    %296 = vsyncpa %s295, 1

</llo_original>
